<compile_context>
chip_gen: v6e
topology: v6e:2x2x1
jax: 0.10.0
libtpu: 0.0.40
codegen_flags: <defaults>
</compile_context>

<pallas_src>
import math

import jax
import jax.numpy as jnp
from jax.experimental import pallas as pl
from jax.experimental.pallas import tpu as pltpu


# ----------------------------------------------------------------------------
# Parameter setup (glue): sinusoidal positional-encoding buffer, identical to
# the PyTorch __init__.
# ----------------------------------------------------------------------------
def make_positional_encoding(d_model, max_len=5000, dtype=jnp.float32):
    position = jnp.arange(max_len, dtype=jnp.float32)[:, None]            # (L, 1)
    div_term = jnp.exp(jnp.arange(0, d_model, 2, dtype=jnp.float32)
                       * (-math.log(10000.0) / d_model))                  # (D/2,)
    pe = jnp.zeros((max_len, 1, d_model), dtype=jnp.float32)
    pe = pe.at[:, 0, 0::2].set(jnp.sin(position * div_term))
    pe = pe.at[:, 0, 1::2].set(jnp.cos(position * div_term))
    return pe.astype(dtype)                                               # (L, 1, D)


def _vmem_capacity_bytes(default=64 * 1024 * 1024):
    """Query per-generation VMEM capacity; conservative fallback off-TPU."""
    try:
        cap = getattr(pltpu.get_tpu_info(), "vmem_capacity_bytes", None)
        if cap:
            return int(cap)
    except Exception:
        pass
    return default


# ----------------------------------------------------------------------------
# Pallas kernel: out = dropout(x + pe) on a (TS, B*D) lane-dense tile.
# ----------------------------------------------------------------------------
def _make_kernel(p, apply_dropout, batch, d_model):
    if apply_dropout:
        # Unsigned threshold p * 2^32, shifted into the signed int32 domain so
        # the compare runs as a plain signed compare on uniform int32 bits.
        thr_i32 = min(int(round(p * 4294967296.0)), 4294967295) - 2147483648
        scale = 1.0 / (1.0 - p)

    def kernel(*refs):
        if apply_dropout:
            x_ref, pe_ref, bits_ref, o_ref = refs
        else:
            x_ref, pe_ref, o_ref = refs

        pe = pe_ref[...]                                      # (TS, D), loaded once
        for b in range(batch):                                # static unroll over batch
            sl = slice(b * d_model, (b + 1) * d_model)        # static lane sub-range
            y = x_ref[:, sl] + pe
            if apply_dropout:
                keep = bits_ref[:, sl] >= jnp.int32(thr_i32)  # keeps with prob 1-p
                y = jnp.where(keep, y * scale, 0.0)           # inverted dropout
            o_ref[:, sl] = y.astype(o_ref.dtype)

    return kernel


# ----------------------------------------------------------------------------
# Wrapper: tiling, specs, dropout-bit generation.
# ----------------------------------------------------------------------------
def positional_encoder(x, pe, *, p=0.1, training=False, rng_key=None):
    """Forward pass of PositionalEncoder.  x: (S, B, D), pe: (max_len, 1, D)."""
    assert 0.0 <= p < 1.0, "dropout p must be in [0, 1)"
    S, B, D = x.shape
    BD = B * D
    apply_dropout = bool(training) and p > 0.0

    x2d = x.reshape(S, BD)                    # free contiguous reshape -> lane-dense
    pe2d = pe[:, 0, :]                        # (max_len, D)

    # --- VMEM-budget-driven sequence tile ------------------------------------
    itemsize = x.dtype.itemsize
    bytes_per_row = 2 * BD * itemsize + D * itemsize          # x + out + pe per row
    if apply_dropout:
        bytes_per_row += BD * 4                               # int32 bits per row
    vmem_cap = _vmem_capacity_bytes()
    budget = min(vmem_cap // 2, 48 * 1024 * 1024)             # leave headroom
    ts = budget // max(1, 2 * bytes_per_row)                  # 2x: double-buffering
    if ts >= S:
        TS = S                                                # single/full blocks
    else:
        TS = max(8, (ts // 8) * 8)                            # sublane-aligned tile

    # pe: cast once to x.dtype if needed (small slice copy only), otherwise pass
    # the full table so XLA does not materialize a pe[:S] copy before the kernel.
    if pe2d.dtype != x.dtype:
        pe2d = pe2d[:S].astype(x.dtype)
    elif TS % 8 != 0:                                         # TS == S and S % 8 != 0
        pe2d = pe2d[:S]

    grid = (pl.cdiv(S, TS),)
    row_map = lambda i: (i, 0)
    in_specs = [pl.BlockSpec((TS, BD), row_map),              # x
                pl.BlockSpec((TS, D), row_map)]               # pe
    inputs = [x2d, pe2d]
    if apply_dropout:
        if rng_key is None:
            rng_key = jax.random.PRNGKey(0)
        bits = jax.lax.bitcast_convert_type(
            jax.random.bits(rng_key, (S, BD), dtype=jnp.uint32), jnp.int32)
        in_specs.append(pl.BlockSpec((TS, BD), row_map))
        inputs.append(bits)

    buffered = 2 * TS * bytes_per_row                         # double-buffered tiles
    vmem_limit = int(min(max(buffered + (8 << 20), 32 << 20), vmem_cap - (2 << 20)))

    out2d = pl.pallas_call(
        _make_kernel(p, apply_dropout, B, D),
        out_shape=jax.ShapeDtypeStruct((S, BD), x.dtype),
        grid=grid,
        in_specs=in_specs,
        out_specs=pl.BlockSpec((TS, BD), row_map),
        compiler_params=pltpu.CompilerParams(
            dimension_semantics=("parallel",),                # no carried state
            vmem_limit_bytes=vmem_limit),
    )(*inputs)
    return out2d.reshape(S, B, D)


# ----------------------------------------------------------------------------
# Demo / correctness check
# ----------------------------------------------------------------------------
if __name__ == "__main__":
    S, B, D = 8, 2, 32                         # seq=8, batch=2, d_model=32
    key = jax.random.PRNGKey(0)
    kx, kdrop = jax.random.split(key)
    x = jax.random.normal(kx, (S, B, D), dtype=jnp.float32)
    pe = make_positional_encoding(d_model=D, max_len=5000)
    ref = x + pe[:S]                           # broadcast over batch, like torch

    # Eval mode: dropout is identity -> must match the pure-JAX reference.
    out_eval = jax.block_until_ready(positional_encoder(x, pe, p=0.1, training=False))
    assert out_eval.shape == (S, B, D)
    assert jnp.allclose(out_eval, ref, atol=1e-6, rtol=1e-6), "eval-mode mismatch"

    # Training mode: inverted dropout; every element is either 0 or ref/(1-p).
    p = 0.1
    out_train = jax.block_until_ready(
        positional_encoder(x, pe, p=p, training=True, rng_key=kdrop))
    assert out_train.shape == (S, B, D)
    kept = out_train != 0.0
    expected = jnp.where(kept, ref * (1.0 / (1.0 - p)), 0.0)
    assert jnp.allclose(out_train, expected, atol=1e-5, rtol=1e-5), "train-mode mismatch"

    print("KERNEL_OK")
</pallas_src>

<mosaic_0001>
module attributes {stable_mosaic.version = 11 : i64} {
  func.func @kernel(%arg0: i32, %arg1: memref<8x64xf32, #tpu.memory_space<vmem>>, %arg2: memref<8x32xf32, #tpu.memory_space<vmem>>, %arg3: memref<8x64xf32, #tpu.memory_space<vmem>>) attributes {dimension_semantics = [#tpu.dimension_semantics<parallel>], iteration_bounds = array<i64: 1>, scalar_prefetch = 0 : i64, scratch_operands = 0 : i64, tpu.core_type = #tpu.core_type<tc>, window_params = [{transform_indices = @transform_0, window_bounds = array<i64: 8, 64>}, {transform_indices = @transform_1, window_bounds = array<i64: 8, 32>}, {transform_indices = @transform_2, window_bounds = array<i64: 8, 64>}]} {
    %c0 = arith.constant 0 : index
    %c0_0 = arith.constant 0 : index
    %0 = vector.load %arg2[%c0, %c0_0] : memref<8x32xf32, #tpu.memory_space<vmem>>, vector<8x32xf32>
    %c0_1 = arith.constant 0 : index
    %c0_2 = arith.constant 0 : index
    %1 = vector.load %arg1[%c0_1, %c0_2] : memref<8x64xf32, #tpu.memory_space<vmem>>, vector<8x32xf32>
    %2 = arith.addf %1, %0 : vector<8x32xf32>
    %c0_3 = arith.constant 0 : index
    %c0_4 = arith.constant 0 : index
    %3 = vector.load %arg3[%c0_3, %c0_4] : memref<8x64xf32, #tpu.memory_space<vmem>>, vector<8x32xf32>
    tpu.vector_store %arg3[%c0_3, %c0_4], %2 {strides = array<i32>} : memref<8x64xf32, #tpu.memory_space<vmem>>, vector<8x32xf32>,
    %c0_5 = arith.constant 0 : index
    %c32 = arith.constant 32 : index
    %4 = vector.load %arg1[%c0_5, %c32] : memref<8x64xf32, #tpu.memory_space<vmem>>, vector<8x32xf32>
    %5 = arith.addf %4, %0 : vector<8x32xf32>
    %c0_6 = arith.constant 0 : index
    %c32_7 = arith.constant 32 : index
    %6 = vector.load %arg3[%c0_6, %c32_7] : memref<8x64xf32, #tpu.memory_space<vmem>>, vector<8x32xf32>
    tpu.vector_store %arg3[%c0_6, %c32_7], %5 {strides = array<i32>} : memref<8x64xf32, #tpu.memory_space<vmem>>, vector<8x32xf32>,
    return
  }
  func.func @transform_0(%arg0: i32) -> (i32, i32) {
    %c0_i32 = arith.constant 0 : i32
    %c0_i32_0 = arith.constant 0 : i32
    return %arg0, %c0_i32 : i32, i32
  }
  func.func @transform_1(%arg0: i32) -> (i32, i32) {
    %c0_i32 = arith.constant 0 : i32
    %c0_i32_0 = arith.constant 0 : i32
    return %arg0, %c0_i32 : i32, i32
  }
  func.func @transform_2(%arg0: i32) -> (i32, i32) {
    %c0_i32 = arith.constant 0 : i32
    %c0_i32_0 = arith.constant 0 : i32
    return %arg0, %c0_i32 : i32, i32
  }
}

</mosaic_0001>

<llo_original>
// kernel: tpu_custom_call.1
$region0: #{tpu_custom_call.1}
  #allocation0 [shape = 'u32[]', space=smem, size = 0x4, offset = 0x4, fixed_abs, tag = 'smem constant byte address 0x4 - core index']
  #allocation1 [shape = 'u32[144,128]{1,0:T(1,128)}', space=vmem, size = 0x12000, scoped, tag = 'internal scratch']
  %s0 = inlined_call_operand.vmem [shape: f32[8,64], index: 0, kind: input, shape index: {}]
  %s1 = inlined_call_operand.vmem [shape: f32[5000,32], index: 1, kind: input, shape index: {}]
  %s2 = inlined_call_operand.hbm [shape: f32[8,64], index: 2, kind: output, shape index: {}]
  %s3 = sld [smem:[#allocation0]]
  $region18: #{tpu_custom_call.1} parent=0
    _
  %s5 = ssub.s32 1, %s3
  %s6 = scalar_select 0, %s5, %s3
  $region1: #{tpu_custom_call.1} parent=0
    #allocation2 [shape = 'u8[4096]{0}', space=vmem, size = 0x1000, scoped, tag = 'output window, operand 0, single buffered']
    #allocation3 [shape = 's32[1]{0}', space=sflag, size = 0x4, scoped, tag = 'scoped memory for tpu_custom_call.1']
    %7 = vsyncpa [#allocation3], 0
    // Predicated region
    $region2: #{tpu_custom_call.1} parent=1 // pred_check
      _
    $region3: #{tpu_custom_call.1} parent=1 // pred_check_branch
      %9 = sbr.rel (0) target = $region5
    $region4: #{tpu_custom_call.1} parent=1 // pred_region
      _
    $region5: #{tpu_custom_call.1} parent=1 // pred_fallthru
      _
    // Predicated region
    $region6: #{tpu_custom_call.1} parent=1 // pred_check
      _
    $region7: #{tpu_custom_call.1} parent=1 // pred_check_branch
      %11 = sbr.rel (0) target = $region9
    $region8: #{tpu_custom_call.1} parent=1 // pred_region
      _
    $region9: #{tpu_custom_call.1} parent=1 // pred_fallthru
      _
    %v12 = vld [vmem:[%s1] sm:$0xff]
    %v13 = vld [vmem:[%s0] sm:$0xff]
    %v14 = vadd.f32 %v13, %v12
    %vm15 = vcmask 261120
    %16 = vst.msk [vmem:[#allocation2] sm:$0xff] %vm15, %v14
    %v17 = vld [vmem:[%s0] sm:$0xff]
    %19 = vrot.lane.b32.xlu0 %v12, 32
    %v20 = vpop.permute.xlu0 %19
    %v22 = vadd.f32 %v17, %v20
    %vm23 = vcmask 523520
    %24 = vst.msk [vmem:[#allocation2] sm:$0xff] %vm23, %v22
    // Predicated region
    $region10: #{tpu_custom_call.1} parent=1 // pred_check
      _
    $region11: #{tpu_custom_call.1} parent=1 // pred_check_branch
      %26 = sbr.rel (0) target = $region13
    $region12: #{tpu_custom_call.1} parent=1 // pred_region
      %s28 = ssub.s32 128, 128
      %29 = vsyncadd [#allocation3], %s28
      %s31 = sshll.u32 [#allocation2], 4
      %s32 = int_to_ptr.vmem [resolvable:$true] %s31
      %34 = dma.vmem_to_hbm [thread:$0]  %s32, 128, %s2, [#allocation3]
    $region13: #{tpu_custom_call.1} parent=1 // pred_fallthru
      _
    // Predicated region
    $region14: #{tpu_custom_call.1} parent=1 // pred_check
      _
    $region15: #{tpu_custom_call.1} parent=1 // pred_check_branch
      %36 = sbr.rel (0) target = $region17
    $region16: #{tpu_custom_call.1} parent=1 // pred_region
      %37 = dma.done [#allocation3], 128
    $region17: #{tpu_custom_call.1} parent=1 // pred_fallthru
      _
    %38 = vsyncpa [#allocation3], 1

</llo_original>
